<compile_context>
chip_gen: v7x
topology: tpu7x:2x2x1
jax: 0.10.0
libtpu: 0.0.40
codegen_flags: <defaults>
</compile_context>

<pallas_src>
import functools

import jax
import jax.numpy as jnp
from jax.experimental import pallas as pl
from jax.experimental.pallas import tpu as pltpu


def _knet_kernel(x_ref, wt_ref, o_ref):
    # x_ref:  (TM, K) batch tile
    # wt_ref: (K, N)  weight, already transposed to [n_input, n_output]
    # o_ref:  (TM, N)
    o_ref[...] = jnp.dot(
        x_ref[...], wt_ref[...], preferred_element_type=jnp.float32
    ).astype(o_ref.dtype)


def _round_up(x, m):
    return ((x + m - 1) // m) * m


def _num_tensorcores():
    """2 for multi-TensorCore chips (v4/v5p/v7x), else 1. Conservative fallback."""
    try:
        kind = jax.devices()[0].device_kind.lower()
    except Exception:  # pragma: no cover - defensive, e.g. no devices yet
        return 1
    return 2 if any(tag in kind for tag in ("v4", "v5p", "v7")) else 1


def _choose_tile(m, tm_max, n_cores):
    """Batch-tile size.

    Single-TC chips: one maximal tile (never split just to get 2 steps).
    Multi-TC chips: split into two tiles only when each half stays >=512 rows,
    so both cores run near the HBM-efficiency knee.
    """
    if m <= tm_max:
        if n_cores >= 2 and m >= 1024:
            half = -(-m // 2)
            return min(_round_up(half, 256), tm_max)
        return m  # full batch in one block (allowed even if not 8-aligned)
    return tm_max


@functools.partial(jax.jit, static_argnames=("tm", "use_bf16"))
def k_net_forward(data, weight, *, tm=2048, use_bf16=False):
    """y = data @ weight.T  (bias-free Linear, orthogonal weight).

    data:   [M, n_input]          float32
    weight: [n_output, n_input]   float32 (PyTorch nn.Linear convention)
    """
    M, K = data.shape
    N, K2 = weight.shape
    assert K == K2, "n_input mismatch"
    assert data.dtype == weight.dtype, "data/weight dtype mismatch"

    # One-time 64 KiB transpose (wrapper-side, negligible) -> kernel does a
    # plain MXU matmul with no per-step operand re-orientation.
    wt = weight.T  # [K, N]
    x = data
    if use_bf16:
        # Opt-in: halves HBM bytes for inputs; accumulation stays f32.
        x = x.astype(jnp.bfloat16)
        wt = wt.astype(jnp.bfloat16)

    tm_eff = _choose_tile(M, tm, _num_tensorcores())
    grid = (pl.cdiv(M, tm_eff),)  # ragged final block handled by masked stores

    in_itemsize = jnp.dtype(x.dtype).itemsize
    out_itemsize = jnp.dtype(data.dtype).itemsize
    cost = pl.CostEstimate(
        flops=2 * M * K * N,
        transcendentals=0,
        bytes_accessed=(M * K + N * K) * in_itemsize + M * N * out_itemsize,
    )

    # Double-buffered x tile + out tile, double-buffered (constant-index) weight,
    # plus 1 MiB slack.  Only raise the scoped-VMEM limit when we actually need
    # more than the smallest (v5e) default of 16 MiB.
    vmem_needed = (
        2 * tm_eff * (K * in_itemsize + N * out_itemsize)
        + 2 * K * N * in_itemsize
        + (1 << 20)
    )
    cp_kwargs = dict(dimension_semantics=("parallel",))
    if vmem_needed > (16 << 20):
        cp_kwargs["vmem_limit_bytes"] = int(vmem_needed)

    return pl.pallas_call(
        _knet_kernel,
        out_shape=jax.ShapeDtypeStruct((M, N), data.dtype),
        grid_spec=pltpu.PrefetchScalarGridSpec(
            num_scalar_prefetch=0,
            grid=grid,
            in_specs=[
                pl.BlockSpec((tm_eff, K), lambda i: (i, 0)),  # batch tile of x
                pl.BlockSpec((K, N), lambda i: (0, 0)),       # resident weight (fetched once)
            ],
            out_specs=pl.BlockSpec((tm_eff, N), lambda i: (i, 0)),
        ),
        compiler_params=pltpu.CompilerParams(**cp_kwargs),
        cost_estimate=cost,
    )(x, wt)


def sample_orthogonal(key, n_output, n_input, dtype=jnp.float32):
    """Deterministic stand-in for geotorch's uniform (Haar) orthogonal sample."""
    a = jax.random.normal(key, (n_output, n_input), dtype=jnp.float32)
    q, r = jnp.linalg.qr(a)
    d = jnp.sign(jnp.diagonal(r))
    d = jnp.where(d == 0, 1.0, d)
    return (q * d[None, :]).astype(dtype)


if __name__ == "__main__":
    key = jax.random.PRNGKey(0)
    k_w, k_x = jax.random.split(key)

    n_input = 128
    n_output = 128
    batch = 256

    weight = sample_orthogonal(k_w, n_output, n_input)            # [n_output, n_input]
    data = jax.random.normal(k_x, (batch, n_input), jnp.float32)  # [batch, n_input]

    out = jax.block_until_ready(k_net_forward(data, weight))
    ref = data @ weight.T
    assert out.shape == (batch, n_output)
    assert jnp.allclose(out, ref, atol=1e-4, rtol=1e-4), "mismatch vs reference"

    # Ragged batch, single full-batch block (no pad/slice in the wrapper).
    data2 = jax.random.normal(jax.random.PRNGKey(1), (200, n_input), jnp.float32)
    out2 = jax.block_until_ready(k_net_forward(data2, weight))
    assert jnp.allclose(out2, data2 @ weight.T, atol=1e-4, rtol=1e-4), \
        "mismatch vs reference (ragged batch)"

    # Force a multi-step grid with a ragged FINAL block (exercises Pallas'
    # masked partial-block path: grid = cdiv(200, 128) = 2).
    out3 = jax.block_until_ready(k_net_forward(data2, weight, tm=128))
    assert jnp.allclose(out3, data2 @ weight.T, atol=1e-4, rtol=1e-4), \
        "mismatch vs reference (ragged final block)"

    # Sanity: orthogonality of the sampled (square) weight: W @ W.T ~= I.
    eye_err = jnp.max(jnp.abs(weight @ weight.T - jnp.eye(n_output)))
    assert eye_err < 1e-3, "weight not orthogonal"

    print("KERNEL_OK")
</pallas_src>

<mosaic_0001>
module attributes {stable_mosaic.version = 11 : i64} {
  func.func @_knet_kernel(%arg0: i32, %arg1: memref<256x128xf32, #tpu.memory_space<vmem>>, %arg2: memref<128x128xf32, #tpu.memory_space<vmem>>, %arg3: memref<256x128xf32, #tpu.memory_space<vmem>>) attributes {dimension_semantics = [#tpu.dimension_semantics<parallel>], iteration_bounds = array<i64: 1>, scalar_prefetch = 0 : i64, scratch_operands = 0 : i64, tpu.core_type = #tpu.core_type<tc>, window_params = [{transform_indices = @transform_0, window_bounds = array<i64: 256, 128>}, {pipeline_mode = #tpu.pipeline_mode<synchronous>, transform_indices = @transform_1, window_bounds = array<i64: 128, 128>}, {transform_indices = @transform_2, window_bounds = array<i64: 256, 128>}]} {
    %c0 = arith.constant 0 : index
    %c0_0 = arith.constant 0 : index
    %0 = vector.load %arg1[%c0, %c0_0] : memref<256x128xf32, #tpu.memory_space<vmem>>, vector<256x128xf32>
    %c0_1 = arith.constant 0 : index
    %c0_2 = arith.constant 0 : index
    %1 = vector.load %arg2[%c0_1, %c0_2] : memref<128x128xf32, #tpu.memory_space<vmem>>, vector<128x128xf32>
    %cst = arith.constant dense<0.000000e+00> : vector<256x128xf32>
    %2 = tpu.matmul %0, %1, %cst {dimension_numbers = #tpu.dot_dimension_numbers<[1], [0], [0], [1], [0, 0, 1, 1], [], []>} : vector<256x128xf32>, vector<128x128xf32>, vector<256x128xf32> -> vector<256x128xf32>
    %c0_3 = arith.constant 0 : index
    %c0_4 = arith.constant 0 : index
    %3 = vector.load %arg3[%c0_3, %c0_4] : memref<256x128xf32, #tpu.memory_space<vmem>>, vector<256x128xf32>
    tpu.vector_store %arg3[%c0_3, %c0_4], %2 {strides = array<i32>} : memref<256x128xf32, #tpu.memory_space<vmem>>, vector<256x128xf32>,
    return
  }
  func.func @transform_0(%arg0: i32) -> (i32, i32) {
    %c0_i32 = arith.constant 0 : i32
    %c0_i32_0 = arith.constant 0 : i32
    return %arg0, %c0_i32 : i32, i32
  }
  func.func @transform_1(%arg0: i32) -> (i32, i32) {
    %c0_i32 = arith.constant 0 : i32
    %c0_i32_0 = arith.constant 0 : i32
    %c0_i32_1 = arith.constant 0 : i32
    return %c0_i32, %c0_i32_0 : i32, i32
  }
  func.func @transform_2(%arg0: i32) -> (i32, i32) {
    %c0_i32 = arith.constant 0 : i32
    %c0_i32_0 = arith.constant 0 : i32
    return %arg0, %c0_i32 : i32, i32
  }
}

</mosaic_0001>

<llo_original>
// kernel: k_net_forward.1
$region0: #{k_net_forward.1}
  #allocation0 [shape = 'u32[]', space=smem, size = 0x4, offset = 0x4, fixed_abs, tag = 'smem constant byte address 0x4 - core index']
  #allocation1 [shape = 'u32[144,128]{1,0:T(1,128)}', space=vmem, size = 0x12000, scoped, tag = 'internal scratch']
  %s0 = inlined_call_operand.vmem [shape: f32[256,128], index: 0, kind: input, shape index: {}]
  %s1 = inlined_call_operand.vmem [shape: f32[128,128], index: 1, kind: input, shape index: {}]
  %s2 = inlined_call_operand.hbm [shape: f32[256,128], index: 2, kind: output, shape index: {}]
  %s3 = sld [smem:[#allocation0]]
  $region18: #{k_net_forward.1} parent=0
    _
  %s5 = ssub.s32 1, %s3
  %s6 = scalar_select 0, %s5, %s3
  $region1: #{k_net_forward.1} parent=0
    #allocation2 [shape = 'u8[131072]{0}', space=vmem, size = 0x20000, scoped, tag = 'output window, operand 0, single buffered']
    #allocation3 [shape = 's32[1]{0}', space=sflag, size = 0x4, scoped, tag = 'scoped memory for k_net_forward.1']
    %7 = vsyncpa [#allocation3], 0
    // Predicated region
    $region2: #{k_net_forward.1} parent=1 // pred_check
      _
    $region3: #{k_net_forward.1} parent=1 // pred_check_branch
      %9 = sbr.rel (0) target = $region5
    $region4: #{k_net_forward.1} parent=1 // pred_region
      _
    $region5: #{k_net_forward.1} parent=1 // pred_fallthru
      _
    // Predicated region
    $region6: #{k_net_forward.1} parent=1 // pred_check
      _
    $region7: #{k_net_forward.1} parent=1 // pred_check_branch
      %11 = sbr.rel (0) target = $region9
    $region8: #{k_net_forward.1} parent=1 // pred_region
      _
    $region9: #{k_net_forward.1} parent=1 // pred_fallthru
      _
    %v12 = vld [vmem:[%s0] sm:$0xff]
    %v13 = vld [vmem:[%s0 + $0x8] sm:$0xff]
    %v14 = vld [vmem:[%s0 + $0x10] sm:$0xff]
    %v15 = vld [vmem:[%s0 + $0x18] sm:$0xff]
    %v16 = vld [vmem:[%s0 + $0x20] sm:$0xff]
    %v17 = vld [vmem:[%s0 + $0x28] sm:$0xff]
    %v18 = vld [vmem:[%s0 + $0x30] sm:$0xff]
    %v19 = vld [vmem:[%s0 + $0x38] sm:$0xff]
    %v20 = vld [vmem:[%s0 + $0x40] sm:$0xff]
    %v21 = vld [vmem:[%s0 + $0x48] sm:$0xff]
    %v22 = vld [vmem:[%s0 + $0x50] sm:$0xff]
    %v23 = vld [vmem:[%s0 + $0x58] sm:$0xff]
    %v24 = vld [vmem:[%s0 + $0x60] sm:$0xff]
    %v25 = vld [vmem:[%s0 + $0x68] sm:$0xff]
    %v26 = vld [vmem:[%s0 + $0x70] sm:$0xff]
    %v27 = vld [vmem:[%s0 + $0x78] sm:$0xff]
    %v28 = vld [vmem:[%s0 + $0x80] sm:$0xff]
    %v29 = vld [vmem:[%s0 + $0x88] sm:$0xff]
    %v30 = vld [vmem:[%s0 + $0x90] sm:$0xff]
    %v31 = vld [vmem:[%s0 + $0x98] sm:$0xff]
    %v32 = vld [vmem:[%s0 + $0xa0] sm:$0xff]
    %v33 = vld [vmem:[%s0 + $0xa8] sm:$0xff]
    %v34 = vld [vmem:[%s0 + $0xb0] sm:$0xff]
    %v35 = vld [vmem:[%s0 + $0xb8] sm:$0xff]
    %v36 = vld [vmem:[%s0 + $0xc0] sm:$0xff]
    %v37 = vld [vmem:[%s0 + $0xc8] sm:$0xff]
    %v38 = vld [vmem:[%s0 + $0xd0] sm:$0xff]
    %v39 = vld [vmem:[%s0 + $0xd8] sm:$0xff]
    %v40 = vld [vmem:[%s0 + $0xe0] sm:$0xff]
    %v41 = vld [vmem:[%s0 + $0xe8] sm:$0xff]
    %v42 = vld [vmem:[%s0 + $0xf0] sm:$0xff]
    %v43 = vld [vmem:[%s0 + $0xf8] sm:$0xff]
    %v44 = vld [vmem:[%s1] sm:$0xff]
    %v45 = vld [vmem:[%s1 + $0x8] sm:$0xff]
    %v46 = vld [vmem:[%s1 + $0x10] sm:$0xff]
    %v47 = vld [vmem:[%s1 + $0x18] sm:$0xff]
    %v48 = vld [vmem:[%s1 + $0x20] sm:$0xff]
    %v49 = vld [vmem:[%s1 + $0x28] sm:$0xff]
    %v50 = vld [vmem:[%s1 + $0x30] sm:$0xff]
    %v51 = vld [vmem:[%s1 + $0x38] sm:$0xff]
    %v52 = vld [vmem:[%s1 + $0x40] sm:$0xff]
    %v53 = vld [vmem:[%s1 + $0x48] sm:$0xff]
    %v54 = vld [vmem:[%s1 + $0x50] sm:$0xff]
    %v55 = vld [vmem:[%s1 + $0x58] sm:$0xff]
    %v56 = vld [vmem:[%s1 + $0x60] sm:$0xff]
    %v57 = vld [vmem:[%s1 + $0x68] sm:$0xff]
    %v58 = vld [vmem:[%s1 + $0x70] sm:$0xff]
    %v59 = vld [vmem:[%s1 + $0x78] sm:$0xff]
    %60 = vmatprep.subr.mxu0 0.0
    %61 = vmatpush1.msra.mxu0 %v44
    %62 = vmatprep.subr.mxu0 0.0
    %63 = vmatpush1.msra.mxu0 %v45
    %64 = vmatprep.subr.mxu0 0.0
    %65 = vmatpush1.msra.mxu0 %v46
    %66 = vmatprep.subr.mxu0 0.0
    %67 = vmatpush1.msra.mxu0 %v47
    %68 = vmatprep.subr.mxu0 0.0
    %69 = vmatpush1.msra.mxu0 %v48
    %70 = vmatprep.subr.mxu0 0.0
    %71 = vmatpush1.msra.mxu0 %v49
    %72 = vmatprep.subr.mxu0 0.0
    %73 = vmatpush1.msra.mxu0 %v50
    %74 = vmatprep.subr.mxu0 0.0
    %75 = vmatpush1.msra.mxu0 %v51
    %76 = vmatprep.subr.mxu0 0.0
    %77 = vmatpush1.msra.mxu0 %v52
    %78 = vmatprep.subr.mxu0 0.0
    %79 = vmatpush1.msra.mxu0 %v53
    %80 = vmatprep.subr.mxu0 0.0
    %81 = vmatpush1.msra.mxu0 %v54
    %82 = vmatprep.subr.mxu0 0.0
    %83 = vmatpush1.msra.mxu0 %v55
    %84 = vmatprep.subr.mxu0 0.0
    %85 = vmatpush1.msra.mxu0 %v56
    %86 = vmatprep.subr.mxu0 0.0
    %87 = vmatpush1.msra.mxu0 %v57
    %88 = vmatprep.subr.mxu0 0.0
    %89 = vmatpush1.msra.mxu0 %v58
    %90 = vmatprep.subr.mxu0 0.0
    %91 = vmatpush1.msra.mxu0 %v59
    %92 = vmatprep.subr.mxu0 0.0
    %93 = vmatpush1.msra.mxu0 0.0
    %94 = vmatprep.subr.mxu0 0.0
    %95 = vmatpush1.msra.mxu0 0.0
    %96 = vmatprep.subr.mxu0 0.0
    %97 = vmatpush1.msra.mxu0 0.0
    %98 = vmatprep.subr.mxu0 0.0
    %99 = vmatpush1.msra.mxu0 0.0
    %100 = vmatprep.subr.mxu0 0.0
    %101 = vmatpush1.msra.mxu0 0.0
    %102 = vmatprep.subr.mxu0 0.0
    %103 = vmatpush1.msra.mxu0 0.0
    %104 = vmatprep.subr.mxu0 0.0
    %105 = vmatpush1.msra.mxu0 0.0
    %106 = vmatprep.subr.mxu0 0.0
    %107 = vmatpush1.msra.mxu0 0.0
    %108 = vmatprep.subr.mxu0 0.0
    %109 = vmatpush1.msra.mxu0 0.0
    %110 = vmatprep.subr.mxu0 0.0
    %111 = vmatpush1.msra.mxu0 0.0
    %112 = vmatprep.subr.mxu0 0.0
    %113 = vmatpush1.msra.mxu0 0.0
    %114 = vmatprep.subr.mxu0 0.0
    %115 = vmatpush1.msra.mxu0 0.0
    %116 = vmatprep.subr.mxu0 0.0
    %117 = vmatpush1.msra.mxu0 0.0
    %118 = vmatprep.subr.mxu0 0.0
    %119 = vmatpush1.msra.mxu0 0.0
    %120 = vmatprep.subr.mxu0 0.0
    %121 = vmatpush1.msra.mxu0 0.0
    %122 = vmatprep.subr.mxu0 0.0
    %123 = vmatpush1.msra.mxu0 0.0
    %124 = vmatprep.mubr.f32.mxu0 0.0
    %125 = vmatmul.mubr.f32.gmra.mrb[0].mxu0 %v12
    %v126 = vpop.f32.mrb[0].mxu0
    %v127 = vadd.f32 0.0, %v126
    %v128 = vpop.f32.mrb[0].mxu0
    %129 = vmatprep.mubr.f32.mxu0 0.0
    %130 = vmatmul.mubr.f32.gmra.mrb[0].mxu0 %v13
    %v131 = vpop.f32.mrb[0].mxu0
    %v132 = vadd.f32 0.0, %v131
    %v133 = vpop.f32.mrb[0].mxu0
    %134 = vmatprep.mubr.f32.mxu0 0.0
    %135 = vmatmul.mubr.f32.gmra.mrb[0].mxu0 %v14
    %v136 = vpop.f32.mrb[0].mxu0
    %v137 = vadd.f32 0.0, %v136
    %v138 = vpop.f32.mrb[0].mxu0
    %139 = vmatprep.mubr.f32.mxu0 0.0
    %140 = vmatmul.mubr.f32.gmra.mrb[0].mxu0 %v15
    %v141 = vpop.f32.mrb[0].mxu0
    %v142 = vadd.f32 0.0, %v141
    %v143 = vpop.f32.mrb[0].mxu0
    %144 = vmatprep.mubr.f32.mxu0 0.0
    %145 = vmatmul.mubr.f32.gmra.mrb[0].mxu0 %v16
    %v146 = vpop.f32.mrb[0].mxu0
    %v147 = vadd.f32 0.0, %v146
    %v148 = vpop.f32.mrb[0].mxu0
    %149 = vmatprep.mubr.f32.mxu0 0.0
    %150 = vmatmul.mubr.f32.gmra.mrb[0].mxu0 %v17
    %v151 = vpop.f32.mrb[0].mxu0
    %v152 = vadd.f32 0.0, %v151
    %v153 = vpop.f32.mrb[0].mxu0
    %154 = vmatprep.mubr.f32.mxu0 0.0
    %155 = vmatmul.mubr.f32.gmra.mrb[0].mxu0 %v18
    %v156 = vpop.f32.mrb[0].mxu0
    %v157 = vadd.f32 0.0, %v156
    %v158 = vpop.f32.mrb[0].mxu0
    %159 = vmatprep.mubr.f32.mxu0 0.0
    %160 = vmatmul.mubr.f32.gmra.mrb[0].mxu0 %v19
    %v161 = vpop.f32.mrb[0].mxu0
    %v162 = vadd.f32 0.0, %v161
    %v163 = vpop.f32.mrb[0].mxu0
    %164 = vmatprep.mubr.f32.mxu0 0.0
    %165 = vmatmul.mubr.f32.gmra.mrb[0].mxu0 %v20
    %v166 = vpop.f32.mrb[0].mxu0
    %v167 = vadd.f32 0.0, %v166
    %v168 = vpop.f32.mrb[0].mxu0
    %169 = vmatprep.mubr.f32.mxu0 0.0
    %170 = vmatmul.mubr.f32.gmra.mrb[0].mxu0 %v21
    %v171 = vpop.f32.mrb[0].mxu0
    %v172 = vadd.f32 0.0, %v171
    %v173 = vpop.f32.mrb[0].mxu0
    %174 = vmatprep.mubr.f32.mxu0 0.0
    %175 = vmatmul.mubr.f32.gmra.mrb[0].mxu0 %v22
    %v176 = vpop.f32.mrb[0].mxu0
    %v177 = vadd.f32 0.0, %v176
    %v178 = vpop.f32.mrb[0].mxu0
    %179 = vmatprep.mubr.f32.mxu0 0.0
    %180 = vmatmul.mubr.f32.gmra.mrb[0].mxu0 %v23
    %v181 = vpop.f32.mrb[0].mxu0
    %v182 = vadd.f32 0.0, %v181
    %v183 = vpop.f32.mrb[0].mxu0
    %184 = vmatprep.mubr.f32.mxu0 0.0
    %185 = vmatmul.mubr.f32.gmra.mrb[0].mxu0 %v24
    %v186 = vpop.f32.mrb[0].mxu0
    %v187 = vadd.f32 0.0, %v186
    %v188 = vpop.f32.mrb[0].mxu0
    %189 = vmatprep.mubr.f32.mxu0 0.0
    %190 = vmatmul.mubr.f32.gmra.mrb[0].mxu0 %v25
    %v191 = vpop.f32.mrb[0].mxu0
    %v192 = vadd.f32 0.0, %v191
    %v193 = vpop.f32.mrb[0].mxu0
    %194 = vmatprep.mubr.f32.mxu0 0.0
    %195 = vmatmul.mubr.f32.gmra.mrb[0].mxu0 %v26
    %v196 = vpop.f32.mrb[0].mxu0
    %v197 = vadd.f32 0.0, %v196
    %v198 = vpop.f32.mrb[0].mxu0
    %199 = vmatprep.mubr.f32.mxu0 0.0
    %200 = vmatmul.mubr.f32.gmra.mrb[0].mxu0 %v27
    %v201 = vpop.f32.mrb[0].mxu0
    %v202 = vadd.f32 0.0, %v201
    %v203 = vpop.f32.mrb[0].mxu0
    %204 = vmatprep.mubr.f32.mxu0 0.0
    %205 = vmatmul.mubr.f32.gmra.mrb[0].mxu0 %v28
    %v206 = vpop.f32.mrb[0].mxu0
    %v207 = vadd.f32 0.0, %v206
    %v208 = vpop.f32.mrb[0].mxu0
    %209 = vmatprep.mubr.f32.mxu0 0.0
    %210 = vmatmul.mubr.f32.gmra.mrb[0].mxu0 %v29
    %v211 = vpop.f32.mrb[0].mxu0
    %v212 = vadd.f32 0.0, %v211
    %v213 = vpop.f32.mrb[0].mxu0
    %214 = vmatprep.mubr.f32.mxu0 0.0
    %215 = vmatmul.mubr.f32.gmra.mrb[0].mxu0 %v30
    %v216 = vpop.f32.mrb[0].mxu0
    %v217 = vadd.f32 0.0, %v216
    %v218 = vpop.f32.mrb[0].mxu0
    %219 = vmatprep.mubr.f32.mxu0 0.0
    %220 = vmatmul.mubr.f32.gmra.mrb[0].mxu0 %v31
    %v221 = vpop.f32.mrb[0].mxu0
    %v222 = vadd.f32 0.0, %v221
    %v223 = vpop.f32.mrb[0].mxu0
    %224 = vmatprep.mubr.f32.mxu0 0.0
    %225 = vmatmul.mubr.f32.gmra.mrb[0].mxu0 %v32
    %v226 = vpop.f32.mrb[0].mxu0
    %v227 = vadd.f32 0.0, %v226
    %v228 = vpop.f32.mrb[0].mxu0
    %229 = vmatprep.mubr.f32.mxu0 0.0
    %230 = vmatmul.mubr.f32.gmra.mrb[0].mxu0 %v33
    %v231 = vpop.f32.mrb[0].mxu0
    %v232 = vadd.f32 0.0, %v231
    %v233 = vpop.f32.mrb[0].mxu0
    %234 = vmatprep.mubr.f32.mxu0 0.0
    %235 = vmatmul.mubr.f32.gmra.mrb[0].mxu0 %v34
    %v236 = vpop.f32.mrb[0].mxu0
    %v237 = vadd.f32 0.0, %v236
    %v238 = vpop.f32.mrb[0].mxu0
    %239 = vmatprep.mubr.f32.mxu0 0.0
    %240 = vmatmul.mubr.f32.gmra.mrb[0].mxu0 %v35
    %v241 = vpop.f32.mrb[0].mxu0
    %v242 = vadd.f32 0.0, %v241
    %v243 = vpop.f32.mrb[0].mxu0
    %244 = vmatprep.mubr.f32.mxu0 0.0
    %245 = vmatmul.mubr.f32.gmra.mrb[0].mxu0 %v36
    %v246 = vpop.f32.mrb[0].mxu0
    %v247 = vadd.f32 0.0, %v246
    %v248 = vpop.f32.mrb[0].mxu0
    %249 = vmatprep.mubr.f32.mxu0 0.0
    %250 = vmatmul.mubr.f32.gmra.mrb[0].mxu0 %v37
    %v251 = vpop.f32.mrb[0].mxu0
    %v252 = vadd.f32 0.0, %v251
    %v253 = vpop.f32.mrb[0].mxu0
    %254 = vmatprep.mubr.f32.mxu0 0.0
    %255 = vmatmul.mubr.f32.gmra.mrb[0].mxu0 %v38
    %v256 = vpop.f32.mrb[0].mxu0
    %v257 = vadd.f32 0.0, %v256
    %v258 = vpop.f32.mrb[0].mxu0
    %259 = vmatprep.mubr.f32.mxu0 0.0
    %260 = vmatmul.mubr.f32.gmra.mrb[0].mxu0 %v39
    %v261 = vpop.f32.mrb[0].mxu0
    %v262 = vadd.f32 0.0, %v261
    %v263 = vpop.f32.mrb[0].mxu0
    %264 = vmatprep.mubr.f32.mxu0 0.0
    %265 = vmatmul.mubr.f32.gmra.mrb[0].mxu0 %v40
    %v266 = vpop.f32.mrb[0].mxu0
    %v267 = vadd.f32 0.0, %v266
    %v268 = vpop.f32.mrb[0].mxu0
    %269 = vmatprep.mubr.f32.mxu0 0.0
    %270 = vmatmul.mubr.f32.gmra.mrb[0].mxu0 %v41
    %v271 = vpop.f32.mrb[0].mxu0
    %v272 = vadd.f32 0.0, %v271
    %v273 = vpop.f32.mrb[0].mxu0
    %274 = vmatprep.mubr.f32.mxu0 0.0
    %275 = vmatmul.mubr.f32.gmra.mrb[0].mxu0 %v42
    %v276 = vpop.f32.mrb[0].mxu0
    %v277 = vadd.f32 0.0, %v276
    %v278 = vpop.f32.mrb[0].mxu0
    %279 = vmatprep.mubr.f32.mxu0 0.0
    %280 = vmatmul.mubr.f32.gmra.mrb[0].mxu0 %v43
    %v281 = vpop.f32.mrb[0].mxu0
    %v282 = vadd.f32 0.0, %v281
    %v283 = vpop.f32.mrb[0].mxu0
    %284 = vdwg.mxu0
    %285 = vst [vmem:[#allocation2] sm:$0xff] %v127
    %286 = vst [vmem:[#allocation2 + $0x8] sm:$0xff] %v132
    %287 = vst [vmem:[#allocation2 + $0x10] sm:$0xff] %v137
    %288 = vst [vmem:[#allocation2 + $0x18] sm:$0xff] %v142
    %289 = vst [vmem:[#allocation2 + $0x20] sm:$0xff] %v147
    %290 = vst [vmem:[#allocation2 + $0x28] sm:$0xff] %v152
    %291 = vst [vmem:[#allocation2 + $0x30] sm:$0xff] %v157
    %292 = vst [vmem:[#allocation2 + $0x38] sm:$0xff] %v162
    %293 = vst [vmem:[#allocation2 + $0x40] sm:$0xff] %v167
    %294 = vst [vmem:[#allocation2 + $0x48] sm:$0xff] %v172
    %295 = vst [vmem:[#allocation2 + $0x50] sm:$0xff] %v177
    %296 = vst [vmem:[#allocation2 + $0x58] sm:$0xff] %v182
    %297 = vst [vmem:[#allocation2 + $0x60] sm:$0xff] %v187
    %298 = vst [vmem:[#allocation2 + $0x68] sm:$0xff] %v192
    %299 = vst [vmem:[#allocation2 + $0x70] sm:$0xff] %v197
    %300 = vst [vmem:[#allocation2 + $0x78] sm:$0xff] %v202
    %301 = vst [vmem:[#allocation2 + $0x80] sm:$0xff] %v207
    %302 = vst [vmem:[#allocation2 + $0x88] sm:$0xff] %v212
    %303 = vst [vmem:[#allocation2 + $0x90] sm:$0xff] %v217
    %304 = vst [vmem:[#allocation2 + $0x98] sm:$0xff] %v222
    %305 = vst [vmem:[#allocation2 + $0xa0] sm:$0xff] %v227
    %306 = vst [vmem:[#allocation2 + $0xa8] sm:$0xff] %v232
    %307 = vst [vmem:[#allocation2 + $0xb0] sm:$0xff] %v237
    %308 = vst [vmem:[#allocation2 + $0xb8] sm:$0xff] %v242
    %309 = vst [vmem:[#allocation2 + $0xc0] sm:$0xff] %v247
    %310 = vst [vmem:[#allocation2 + $0xc8] sm:$0xff] %v252
    %311 = vst [vmem:[#allocation2 + $0xd0] sm:$0xff] %v257
    %312 = vst [vmem:[#allocation2 + $0xd8] sm:$0xff] %v262
    %313 = vst [vmem:[#allocation2 + $0xe0] sm:$0xff] %v267
    %314 = vst [vmem:[#allocation2 + $0xe8] sm:$0xff] %v272
    %315 = vst [vmem:[#allocation2 + $0xf0] sm:$0xff] %v277
    %316 = vst [vmem:[#allocation2 + $0xf8] sm:$0xff] %v282
    // Predicated region
    $region10: #{k_net_forward.1} parent=1 // pred_check
      _
    $region11: #{k_net_forward.1} parent=1 // pred_check_branch
      %318 = sbr.rel (0) target = $region13
    $region12: #{k_net_forward.1} parent=1 // pred_region
      %s320 = ssub.s32 4096, 4096
      %321 = vsyncadd [#allocation3], %s320
      %s322 = sshll.u32 [#allocation2], 4
      %s323 = int_to_ptr.vmem [resolvable:$true] %s322
      %328 = dma.vmem_to_hbm [thread:$0]  %s323, 4096, %s2, [#allocation3], 128, 128, 8
    $region13: #{k_net_forward.1} parent=1 // pred_fallthru
      _
    // Predicated region
    $region14: #{k_net_forward.1} parent=1 // pred_check
      _
    $region15: #{k_net_forward.1} parent=1 // pred_check_branch
      %330 = sbr.rel (0) target = $region17
    $region16: #{k_net_forward.1} parent=1 // pred_region
      %331 = dma.done [#allocation3], 4096
    $region17: #{k_net_forward.1} parent=1 // pred_fallthru
      _
    %332 = vsyncpa [#allocation3], 1

</llo_original>
